<compile_context>
chip_gen: v5e
topology: v5e:2x2
jax: 0.10.0
libtpu: 0.0.40
codegen_flags: <defaults>
</compile_context>

<pallas_src>
import functools

import jax
import jax.numpy as jnp
from jax import lax
from jax.experimental import pallas as pl
from jax.experimental.pallas import tpu as pltpu


def _round_up(x, m):
    return (x + m - 1) // m * m


_VMEM_BUDGET = 40 * 1024 * 1024  # conservative: v7x has 64 MiB VMEM per TensorCore


def _contrastive_kernel(ip_ref, jp_ref, x_rows_ref, x_cols_ref, tcol_ref,
                        trow_ref, o_ref, *scratch, margin, q, num_k, block_m):
    p = pl.program_id(0)
    k = pl.program_id(1)

    def epilogue(sim):
        # sim: (block_m, block_n) f32 similarity tile.
        same = tcol_ref[...] == trow_ref[...]               # (BM,1) == (1,BN)
        # pos branch: same  & sim < 1      -> 1 - sim  (== max(1 - sim, 0))
        # neg branch: ~same & sim > margin -> sim
        elem = jnp.where(
            same,
            jnp.maximum(1.0 - sim, 0.0),
            jnp.where(sim > margin, sim, 0.0),
        )
        # VALU-only fold into a lane-dense (8, BN) partial; the final scalar
        # reduce happens once in the wrapper (no cross-lane XLU reduce or
        # scalar broadcast in the per-tile epilogue).
        partial = elem[0:8, :]
        for s in range(8, block_m, 8):
            partial = partial + elem[s:s + 8, :]
        # Symmetry weight: tiles strictly above the row-block square are
        # counted twice (their mirror tiles are never visited).
        i = ip_ref[p]
        j = jp_ref[p]
        w = jnp.where(j >= (i + 1) * q, 2.0, 1.0)
        o_ref[...] = (w * partial)[None, :, :]

    if num_k == 1:
        # Single-shot contraction: no accumulator zero/load/store round trip.
        sim = lax.dot_general(
            x_rows_ref[...], x_cols_ref[...],
            (((1,), (1,)), ((), ())),
            preferred_element_type=jnp.float32)
        epilogue(sim)
    else:
        acc_ref = scratch[0]

        @pl.when(k == 0)
        def _init_acc():
            acc_ref[...] = jnp.zeros_like(acc_ref)

        # Row slab is resident as (num_k, block_m, block_k); pick the current
        # feature chunk with a dynamic leading index (no re-DMA across j or k).
        acc_ref[...] += lax.dot_general(
            x_rows_ref[k], x_cols_ref[...],
            (((1,), (1,)), ((), ())),
            preferred_element_type=jnp.float32)

        @pl.when(k == num_k - 1)
        def _finalize():
            epilogue(acc_ref[...])


def contrastive_loss(inputs, targets, margin=0.3, *,
                     block_m=None, block_n=None, block_k=None):
    """inputs: (N, D) float (f32 or bf16), targets: (N,) int labels.

    Returns the scalar f32 contrastive loss of the reference PyTorch module.
    """
    assert inputs.ndim == 2, "inputs must be (N, D)"
    n, d = inputs.shape
    itemsize = jnp.dtype(inputs.dtype).itemsize
    d_pad = _round_up(d, 128)

    # ---- tile selection ----------------------------------------------------
    if block_k is None:
        if d_pad <= 2048:
            block_k = d_pad
        else:
            block_k = next(c for c in (2048, 1024, 512, 256, 128)
                           if d_pad % c == 0)
    assert block_k % 128 == 0 and d_pad % block_k == 0
    num_k = d_pad // block_k

    if block_n is None:
        block_n = 256 if _round_up(n, 128) >= 256 else 128
    assert block_n % 128 == 0

    if block_m is None:
        n0 = _round_up(n, block_n)
        # Large resident row slab (AI ~ 2*block_m/itemsize flops/byte), but keep
        # >= 2 row blocks when possible and stay inside the VMEM budget.
        cap = min(1024, n0)
        if n0 >= 2 * block_n:
            cap = min(cap, max(block_n, (n0 // 2) // block_n * block_n))
        bm = cap
        while bm > block_n:
            need = (2 * bm * d_pad * itemsize
                    + 2 * block_n * block_k * itemsize
                    + (bm * block_n * 4 if num_k > 1 else 0))
            if need <= _VMEM_BUDGET:
                break
            bm -= block_n
        block_m = bm
    assert block_m % block_n == 0 and block_m >= block_n
    q = block_m // block_n

    n_pad = _round_up(n, block_m)
    num_i = n_pad // block_m
    num_j = n_pad // block_n
    # TODO(synk): if 2*block_m*d_pad*itemsize exceeds VMEM even at
    # block_m == block_n (extremely large D), a non-resident k-blocked row
    # path would be needed; not implemented here.

    # ---- padding -------------------------------------------------------------
    x = inputs
    if (n_pad, d_pad) != (n, d):
        x = jnp.pad(x, ((0, n_pad - n), (0, d_pad - d)))

    t = targets.reshape(n).astype(jnp.int32)
    if n_pad != n:
        # Distinct sentinels for padded rows vs padded cols: padded entries
        # never compare equal and their sim is 0, so they contribute exactly 0
        # through both branches (no iota masks needed in the kernel).
        base = jnp.min(t)
        t_col = jnp.concatenate([t, jnp.broadcast_to(base - 1, (n_pad - n,))])
        t_row = jnp.concatenate([t, jnp.broadcast_to(base - 2, (n_pad - n,))])
    else:
        t_col, t_row = t, t
    t_col = t_col.reshape(n_pad, 1)
    t_row = t_row.reshape(1, n_pad)

    # ---- triangular pair grid (sim is symmetric; only its sum is consumed) ---
    pairs_i, pairs_j = [], []
    for i in range(num_i):
        for j in range(i * q, num_j):
            pairs_i.append(i)
            pairs_j.append(j)
    num_pairs = len(pairs_i)
    ip = jnp.asarray(pairs_i, dtype=jnp.int32)
    jp = jnp.asarray(pairs_j, dtype=jnp.int32)

    # ---- BlockSpecs ------------------------------------------------------------
    if num_k == 1:
        x_rows = x
        rows_spec = pl.BlockSpec((block_m, d_pad),
                                 lambda p, k, ip_r, jp_r: (ip_r[p], 0))
    else:
        # (num_k, n_pad, block_k): the whole feature extent of a row block is
        # resident; the kernel indexes chunk k on the leading axis.
        x_rows = x.reshape(n_pad, num_k, block_k).swapaxes(0, 1)
        rows_spec = pl.BlockSpec((num_k, block_m, block_k),
                                 lambda p, k, ip_r, jp_r: (0, ip_r[p], 0))
    cols_spec = pl.BlockSpec((block_n, block_k),
                             lambda p, k, ip_r, jp_r: (jp_r[p], k))
    tcol_spec = pl.BlockSpec((block_m, 1), lambda p, k, ip_r, jp_r: (ip_r[p], 0))
    trow_spec = pl.BlockSpec((1, block_n), lambda p, k, ip_r, jp_r: (0, jp_r[p]))
    out_spec = pl.BlockSpec((1, 8, block_n), lambda p, k, ip_r, jp_r: (p, 0, 0))

    scratch_shapes = ([pltpu.VMEM((block_m, block_n), jnp.float32)]
                      if num_k > 1 else [])

    vmem_need = (2 * block_m * d_pad * itemsize            # resident row slab (2 buffers)
                 + 2 * block_n * block_k * itemsize        # streamed column slab
                 + (block_m * block_n * 4 if num_k > 1 else 0)
                 + 2 * 8 * block_n * 4                     # per-pair output block
                 + 2 * (block_m + block_n) * 4)            # label tiles
    vmem_limit = int(min(64 * 1024 * 1024,
                         max(32 * 1024 * 1024, vmem_need + 8 * 1024 * 1024)))

    cost = pl.CostEstimate(
        flops=2 * num_pairs * block_m * block_n * d_pad,
        transcendentals=0,
        bytes_accessed=(num_i * block_m * d_pad * itemsize       # each row slab once
                        + num_pairs * block_n * d_pad * itemsize  # column slabs
                        + num_pairs * (block_m + block_n) * 4     # labels
                        + num_pairs * 8 * block_n * 4),           # partial sums
    )

    kernel = functools.partial(
        _contrastive_kernel, margin=float(margin), q=q, num_k=num_k,
        block_m=block_m)

    out = pl.pallas_call(
        kernel,
        out_shape=jax.ShapeDtypeStruct((num_pairs, 8, block_n), jnp.float32),
        grid_spec=pltpu.PrefetchScalarGridSpec(
            num_scalar_prefetch=2,
            grid=(num_pairs, num_k),
            in_specs=[rows_spec, cols_spec, tcol_spec, trow_spec],
            out_specs=out_spec,
            scratch_shapes=scratch_shapes,
        ),
        compiler_params=pltpu.CompilerParams(
            dimension_semantics=("parallel", "arbitrary"),
            vmem_limit_bytes=vmem_limit,
        ),
        cost_estimate=cost,
    )(ip, jp, x_rows, x, t_col, t_row)

    # Single deferred reduction over the (num_pairs, 8, block_n) partials.
    return jnp.sum(out) / n


def _reference_loss(inputs, targets, margin=0.3):
    """Pure-JAX reference mirroring the PyTorch loop semantics (vectorized)."""
    xf = inputs.astype(jnp.float32)
    sim = jnp.matmul(xf, xf.T, precision=lax.Precision.HIGHEST)
    same = targets[:, None] == targets[None, :]
    pos = jnp.sum(jnp.where(same & (sim < 1.0), 1.0 - sim, 0.0))
    neg = jnp.sum(jnp.where((~same) & (sim > margin), sim, 0.0))
    return (pos + neg) / inputs.shape[0]


if __name__ == "__main__":
    key = jax.random.PRNGKey(0)
    k1, k2, k3, k4 = jax.random.split(key, 4)

    # Case 1: small, padded to a single 128x128 tile (num_k == 1 fast path,
    # sentinel-label padding).
    N1, D1 = 24, 32
    x1 = jax.random.normal(k1, (N1, D1), dtype=jnp.float32)
    x1 = x1 / jnp.linalg.norm(x1, axis=1, keepdims=True)
    t1 = jax.random.randint(k2, (N1,), 0, 4, dtype=jnp.int32)
    loss1 = contrastive_loss(x1, t1, margin=0.3)
    jax.block_until_ready(loss1)
    ref1 = _reference_loss(x1, t1, margin=0.3)
    assert jnp.allclose(loss1, ref1, rtol=1e-3, atol=1e-3), (loss1, ref1)

    # Case 2: forced tiles -> triangular pair grid with q=2 (2 row blocks,
    # 4 col blocks, 6 pairs incl. 2x-weighted off-diagonal tiles) and a
    # feature-chunked contraction (num_k == 2, f32 accumulator path).
    N2, D2 = 300, 160
    x2 = jax.random.normal(k3, (N2, D2), dtype=jnp.float32)
    x2 = x2 / jnp.linalg.norm(x2, axis=1, keepdims=True)
    t2 = jax.random.randint(k4, (N2,), 0, 8, dtype=jnp.int32)
    loss2 = contrastive_loss(x2, t2, margin=0.3,
                             block_m=256, block_n=128, block_k=128)
    jax.block_until_ready(loss2)
    ref2 = _reference_loss(x2, t2, margin=0.3)
    assert jnp.allclose(loss2, ref2, rtol=1e-3, atol=1e-3), (loss2, ref2)

    # Case 3: auto-picked tiles (block_m=block_n=256, q=1, 3 pairs) with the
    # bf16 MXU fast path (f32 accumulation).
    loss3 = contrastive_loss(x2.astype(jnp.bfloat16), t2, margin=0.3)
    jax.block_until_ready(loss3)
    assert jnp.allclose(loss3, ref2, rtol=5e-2, atol=5e-2), (loss3, ref2)

    print("KERNEL_OK")
</pallas_src>

<mosaic_0001>
module attributes {stable_mosaic.version = 11 : i64} {
  func.func @_contrastive_kernel(%arg0: i32, %arg1: i32, %arg2: memref<1xi32, #tpu.memory_space<smem>>, %arg3: memref<1xi32, #tpu.memory_space<smem>>, %arg4: memref<128x128xf32, #tpu.memory_space<vmem>>, %arg5: memref<128x128xf32, #tpu.memory_space<vmem>>, %arg6: memref<128x1xi32, #tpu.memory_space<vmem>>, %arg7: memref<1x128xi32, #tpu.memory_space<vmem>>, %arg8: memref<1x8x128xf32, #tpu.memory_space<vmem>>) attributes {dimension_semantics = [#tpu.dimension_semantics<parallel>, #tpu.dimension_semantics<arbitrary>], iteration_bounds = array<i64: 1, 1>, scalar_prefetch = 2 : i64, scratch_operands = 0 : i64, tpu.core_type = #tpu.core_type<tc>, window_params = [{transform_indices = @transform_0, window_bounds = array<i64: 128, 128>}, {transform_indices = @transform_1, window_bounds = array<i64: 128, 128>}, {transform_indices = @transform_2, window_bounds = array<i64: 128, 1>}, {transform_indices = @transform_3, window_bounds = array<i64: 1, 128>}, {transform_indices = @transform_4, window_bounds = array<i64: 1, 8, 128>}]} {
    %c0 = arith.constant 0 : index
    %c0_0 = arith.constant 0 : index
    %0 = vector.load %arg4[%c0, %c0_0] : memref<128x128xf32, #tpu.memory_space<vmem>>, vector<128x128xf32>
    %c0_1 = arith.constant 0 : index
    %c0_2 = arith.constant 0 : index
    %1 = vector.load %arg5[%c0_1, %c0_2] : memref<128x128xf32, #tpu.memory_space<vmem>>, vector<128x128xf32>
    %cst = arith.constant dense<0.000000e+00> : vector<128x128xf32>
    %2 = tpu.matmul %0, %1, %cst {dimension_numbers = #tpu.dot_dimension_numbers<[1], [1], [0], [0], [0, 0, 1, 0], [], []>} : vector<128x128xf32>, vector<128x128xf32>, vector<128x128xf32> -> vector<128x128xf32>
    %c0_3 = arith.constant 0 : index
    %c0_4 = arith.constant 0 : index
    %3 = vector.load %arg6[%c0_3, %c0_4] : memref<128x1xi32, #tpu.memory_space<vmem>>, vector<128x1xi32>
    %c0_5 = arith.constant 0 : index
    %c0_6 = arith.constant 0 : index
    %4 = vector.load %arg7[%c0_5, %c0_6] : memref<1x128xi32, #tpu.memory_space<vmem>>, vector<1x128xi32>
    %5 = vector.broadcast %3 : vector<128x1xi32> to vector<128x128xi32>
    %6 = vector.broadcast %4 : vector<1x128xi32> to vector<128x128xi32>
    %7 = arith.cmpi eq, %5, %6 : vector<128x128xi32>
    %cst_7 = arith.constant 1.000000e+00 : f32
    %8 = vector.broadcast %cst_7 : f32 to vector<128x128xf32>
    %9 = arith.subf %8, %2 : vector<128x128xf32>
    %cst_8 = arith.constant 0.000000e+00 : f32
    %10 = vector.broadcast %cst_8 : f32 to vector<128x128xf32>
    %11 = arith.maximumf %9, %10 : vector<128x128xf32>
    %cst_9 = arith.constant 3.000000e-01 : f32
    %12 = vector.broadcast %cst_9 : f32 to vector<128x128xf32>
    %13 = arith.cmpf ogt, %2, %12 : vector<128x128xf32>
    %cst_10 = arith.constant 0.000000e+00 : f32
    %14 = vector.broadcast %cst_10 : f32 to vector<128x128xf32>
    %15 = arith.select %13, %2, %14 : vector<128x128xi1>, vector<128x128xf32>
    %16 = arith.select %7, %11, %15 : vector<128x128xi1>, vector<128x128xf32>
    %17 = vector.extract_strided_slice %16 {offsets = [0, 0], sizes = [8, 128], strides = [1, 1]} : vector<128x128xf32> to vector<8x128xf32>
    %18 = vector.extract_strided_slice %16 {offsets = [8, 0], sizes = [8, 128], strides = [1, 1]} : vector<128x128xf32> to vector<8x128xf32>
    %19 = arith.addf %17, %18 : vector<8x128xf32>
    %20 = vector.extract_strided_slice %16 {offsets = [16, 0], sizes = [8, 128], strides = [1, 1]} : vector<128x128xf32> to vector<8x128xf32>
    %21 = arith.addf %19, %20 : vector<8x128xf32>
    %22 = vector.extract_strided_slice %16 {offsets = [24, 0], sizes = [8, 128], strides = [1, 1]} : vector<128x128xf32> to vector<8x128xf32>
    %23 = arith.addf %21, %22 : vector<8x128xf32>
    %24 = vector.extract_strided_slice %16 {offsets = [32, 0], sizes = [8, 128], strides = [1, 1]} : vector<128x128xf32> to vector<8x128xf32>
    %25 = arith.addf %23, %24 : vector<8x128xf32>
    %26 = vector.extract_strided_slice %16 {offsets = [40, 0], sizes = [8, 128], strides = [1, 1]} : vector<128x128xf32> to vector<8x128xf32>
    %27 = arith.addf %25, %26 : vector<8x128xf32>
    %28 = vector.extract_strided_slice %16 {offsets = [48, 0], sizes = [8, 128], strides = [1, 1]} : vector<128x128xf32> to vector<8x128xf32>
    %29 = arith.addf %27, %28 : vector<8x128xf32>
    %30 = vector.extract_strided_slice %16 {offsets = [56, 0], sizes = [8, 128], strides = [1, 1]} : vector<128x128xf32> to vector<8x128xf32>
    %31 = arith.addf %29, %30 : vector<8x128xf32>
    %32 = vector.extract_strided_slice %16 {offsets = [64, 0], sizes = [8, 128], strides = [1, 1]} : vector<128x128xf32> to vector<8x128xf32>
    %33 = arith.addf %31, %32 : vector<8x128xf32>
    %34 = vector.extract_strided_slice %16 {offsets = [72, 0], sizes = [8, 128], strides = [1, 1]} : vector<128x128xf32> to vector<8x128xf32>
    %35 = arith.addf %33, %34 : vector<8x128xf32>
    %36 = vector.extract_strided_slice %16 {offsets = [80, 0], sizes = [8, 128], strides = [1, 1]} : vector<128x128xf32> to vector<8x128xf32>
    %37 = arith.addf %35, %36 : vector<8x128xf32>
    %38 = vector.extract_strided_slice %16 {offsets = [88, 0], sizes = [8, 128], strides = [1, 1]} : vector<128x128xf32> to vector<8x128xf32>
    %39 = arith.addf %37, %38 : vector<8x128xf32>
    %40 = vector.extract_strided_slice %16 {offsets = [96, 0], sizes = [8, 128], strides = [1, 1]} : vector<128x128xf32> to vector<8x128xf32>
    %41 = arith.addf %39, %40 : vector<8x128xf32>
    %42 = vector.extract_strided_slice %16 {offsets = [104, 0], sizes = [8, 128], strides = [1, 1]} : vector<128x128xf32> to vector<8x128xf32>
    %43 = arith.addf %41, %42 : vector<8x128xf32>
    %44 = vector.extract_strided_slice %16 {offsets = [112, 0], sizes = [8, 128], strides = [1, 1]} : vector<128x128xf32> to vector<8x128xf32>
    %45 = arith.addf %43, %44 : vector<8x128xf32>
    %46 = vector.extract_strided_slice %16 {offsets = [120, 0], sizes = [8, 128], strides = [1, 1]} : vector<128x128xf32> to vector<8x128xf32>
    %47 = arith.addf %45, %46 : vector<8x128xf32>
    %48 = arith.index_cast %arg0 : i32 to index
    %49 = memref.load %arg2[%48] : memref<1xi32, #tpu.memory_space<smem>>
    %50 = arith.index_cast %arg0 : i32 to index
    %51 = memref.load %arg3[%50] : memref<1xi32, #tpu.memory_space<smem>>
    %c1_i32 = arith.constant 1 : i32
    %52 = arith.addi %49, %c1_i32 : i32
    %c1_i32_11 = arith.constant 1 : i32
    %53 = arith.muli %52, %c1_i32_11 : i32
    %54 = arith.cmpi sge, %51, %53 : i32
    %cst_12 = arith.constant 2.000000e+00 : f32
    %cst_13 = arith.constant 1.000000e+00 : f32
    %55 = arith.select %54, %cst_12, %cst_13 : f32
    %56 = vector.broadcast %55 : f32 to vector<8x128xf32>
    %57 = arith.mulf %56, %47 : vector<8x128xf32>
    %58 = vector.shape_cast %57 : vector<8x128xf32> to vector<1x8x128xf32>
    %c0_14 = arith.constant 0 : index
    %c0_15 = arith.constant 0 : index
    %c0_16 = arith.constant 0 : index
    %59 = vector.load %arg8[%c0_14, %c0_15, %c0_16] : memref<1x8x128xf32, #tpu.memory_space<vmem>>, vector<1x8x128xf32>
    tpu.vector_store %arg8[%c0_14, %c0_15, %c0_16], %58 {strides = array<i32>} : memref<1x8x128xf32, #tpu.memory_space<vmem>>, vector<1x8x128xf32>,
    return
  }
  func.func @transform_0(%arg0: i32, %arg1: i32, %arg2: memref<1xi32, #tpu.memory_space<smem>>, %arg3: memref<1xi32, #tpu.memory_space<smem>>) -> (i32, i32) {
    %0 = arith.index_cast %arg0 : i32 to index
    %1 = memref.load %arg2[%0] : memref<1xi32, #tpu.memory_space<smem>>
    %c0_i32 = arith.constant 0 : i32
    %c0_i32_0 = arith.constant 0 : i32
    return %1, %c0_i32 : i32, i32
  }
  func.func @transform_1(%arg0: i32, %arg1: i32, %arg2: memref<1xi32, #tpu.memory_space<smem>>, %arg3: memref<1xi32, #tpu.memory_space<smem>>) -> (i32, i32) {
    %0 = arith.index_cast %arg0 : i32 to index
    %1 = memref.load %arg3[%0] : memref<1xi32, #tpu.memory_space<smem>>
    %c0_i32 = arith.constant 0 : i32
    return %1, %arg1 : i32, i32
  }
  func.func @transform_2(%arg0: i32, %arg1: i32, %arg2: memref<1xi32, #tpu.memory_space<smem>>, %arg3: memref<1xi32, #tpu.memory_space<smem>>) -> (i32, i32) {
    %0 = arith.index_cast %arg0 : i32 to index
    %1 = memref.load %arg2[%0] : memref<1xi32, #tpu.memory_space<smem>>
    %c0_i32 = arith.constant 0 : i32
    %c0_i32_0 = arith.constant 0 : i32
    return %1, %c0_i32 : i32, i32
  }
  func.func @transform_3(%arg0: i32, %arg1: i32, %arg2: memref<1xi32, #tpu.memory_space<smem>>, %arg3: memref<1xi32, #tpu.memory_space<smem>>) -> (i32, i32) {
    %0 = arith.index_cast %arg0 : i32 to index
    %1 = memref.load %arg3[%0] : memref<1xi32, #tpu.memory_space<smem>>
    %c0_i32 = arith.constant 0 : i32
    %c0_i32_0 = arith.constant 0 : i32
    return %c0_i32, %1 : i32, i32
  }
  func.func @transform_4(%arg0: i32, %arg1: i32, %arg2: memref<1xi32, #tpu.memory_space<smem>>, %arg3: memref<1xi32, #tpu.memory_space<smem>>) -> (i32, i32, i32) {
    %c0_i32 = arith.constant 0 : i32
    %c0_i32_0 = arith.constant 0 : i32
    %c0_i32_1 = arith.constant 0 : i32
    return %arg0, %c0_i32, %c0_i32_0 : i32, i32, i32
  }
}

</mosaic_0001>

<llo_original>
// kernel: tpu_custom_call.1
$region0: #{tpu_custom_call.1}
  #allocation0 [shape = 'u32[]', space=smem, size = 0x4, offset = 0x4, fixed_abs, tag = 'smem constant byte address 0x4 - core index']
  #allocation1 [shape = 'u32[72,128]{1,0:T(1,128)}', space=vmem, size = 0x9000, scoped, tag = 'internal scratch']
  #allocation2 [shape = 's32[1]{0}', space=sflag, size = 0x4, scoped, tag = 'scoped memory for tpu_custom_call.1']
  #allocation3 [shape = 's32[1]{0:T(128)S(6)}', space=smem, size = 0x200, scoped, tag = 'prefetched SMEM operand 0']
  #allocation4 [shape = 's32[1]{0:T(128)S(6)}', space=smem, size = 0x200, scoped, tag = 'prefetched SMEM operand 1']
  %s0 = inlined_call_operand.<no memory space> [shape: s32[1], index: 0, kind: input, shape index: {}]
  %s1 = inlined_call_operand.<no memory space> [shape: s32[1], index: 1, kind: input, shape index: {}]
  %s2 = inlined_call_operand.vmem [shape: f32[128,128], index: 2, kind: input, shape index: {}]
  %s3 = inlined_call_operand.hbm [shape: f32[128,128], index: 3, kind: input, shape index: {}]
  %s4 = inlined_call_operand.vmem [shape: s32[128,1], index: 4, kind: input, shape index: {}]
  %s5 = inlined_call_operand.vmem [shape: s32[1,128], index: 5, kind: input, shape index: {}]
  %s6 = inlined_call_operand.hbm [shape: f32[1,8,128], index: 6, kind: output, shape index: {}]
  %s7 = sld [smem:[#allocation0]]
  $region30: #{tpu_custom_call.1} parent=0
    _
  %s9 = ssub.s32 1, %s7
  %s10 = scalar_select 0, %s9, %s7
  %11 = sst [smem:[#allocation3]] %s0
  %12 = sst [smem:[#allocation4]] %s1
  $region1: #{tpu_custom_call.1} parent=0
    #allocation5 [shape = 'u8[65536]{0}', space=vmem, size = 0x10000, scoped, tag = 'input window, operand 3, single buffered']
    #allocation6 [shape = 's32[1]{0}', space=sflag, size = 0x4, scoped, tag = 'scoped memory for tpu_custom_call.1']
    #allocation7 [shape = 's32[1]{0}', space=sflag, size = 0x4, scoped, tag = 'scoped memory for tpu_custom_call.1']
    #allocation8 [shape = 'u8[4096]{0}', space=vmem, size = 0x1000, scoped, tag = 'output window, operand 0, single buffered']
    %13 = vsyncpa [#allocation6], 0
    %14 = vsyncpa [#allocation7], 0
    // Predicated region
    $region2: #{tpu_custom_call.1} parent=1 // pred_check
      _
    $region3: #{tpu_custom_call.1} parent=1 // pred_check_branch
      %16 = sbr.rel (0) target = $region5
    $region4: #{tpu_custom_call.1} parent=1 // pred_region
      %s17 = sld [smem:[#allocation3]]
      %s18 = smul.u32 16, %s17
      %p19 = scmp.lt.s32.totalorder %s18, 15
      %s20 = scalar_select %p19, %s18, 15
      %s21 = smul.addr %s20, 8
      %s22 = scalar_lea.vmem %s2, %s21
      %s23 = sld [smem:[#allocation3]]
      %s24 = smul.u32 16, %s23
    $region5: #{tpu_custom_call.1} parent=1 // pred_fallthru
      _
    // Predicated region
    $region6: #{tpu_custom_call.1} parent=1 // pred_check
      _
    $region7: #{tpu_custom_call.1} parent=1 // pred_check_branch
      %26 = sbr.rel (0) target = $region9
    $region8: #{tpu_custom_call.1} parent=1 // pred_region
      %s27 = sld [smem:[#allocation4]]
      %s28 = smul.u32 16, %s27
      %30 = vsyncadd [#allocation6], 0
      %s31 = smul.addr %s28, 8
      %s32 = scalar_lea.hbm %s3, %s31
      %s33 = sshll.u32 %s32, 4
      %s34 = int_to_ptr.hbm [resolvable:$true] %s33
      %s35 = sshll.u32 [#allocation5], 4
      %s36 = int_to_ptr.vmem [resolvable:$true] %s35
      %41 = dma.hbm_to_vmem [thread:$0]  %s34, 2048, %s36, [#allocation6], 128, 128, 8
    $region9: #{tpu_custom_call.1} parent=1 // pred_fallthru
      _
    // Predicated region
    $region10: #{tpu_custom_call.1} parent=1 // pred_check
      _
    $region11: #{tpu_custom_call.1} parent=1 // pred_check_branch
      %43 = sbr.rel (0) target = $region13
    $region12: #{tpu_custom_call.1} parent=1 // pred_region
      %s44 = sld [smem:[#allocation3]]
      %s45 = smul.u32 16, %s44
      %p46 = scmp.lt.s32.totalorder %s45, 15
      %s47 = scalar_select %p46, %s45, 15
      %s48 = smul.addr %s47, 8
      %s49 = scalar_lea.vmem %s4, %s48
      %s50 = sld [smem:[#allocation3]]
      %s51 = smul.u32 16, %s50
    $region13: #{tpu_custom_call.1} parent=1 // pred_fallthru
      _
    // Predicated region
    $region14: #{tpu_custom_call.1} parent=1 // pred_check
      _
    $region15: #{tpu_custom_call.1} parent=1 // pred_check_branch
      %53 = sbr.rel (0) target = $region17
    $region16: #{tpu_custom_call.1} parent=1 // pred_region
      %s54 = sld [smem:[#allocation4]]
      %p55 = scmp.lt.s32.totalorder %s54, 0
      %s56 = scalar_select %p55, %s54, 0
      %s57 = scalar_lea.vmem %s5, %s56
      %s58 = sld [smem:[#allocation4]]
    $region17: #{tpu_custom_call.1} parent=1 // pred_fallthru
      _
    // Predicated region
    $region18: #{tpu_custom_call.1} parent=1 // pred_check
      _
    $region19: #{tpu_custom_call.1} parent=1 // pred_check_branch
      %60 = sbr.rel (0) target = $region21
    $region20: #{tpu_custom_call.1} parent=1 // pred_region
      %62 = dma.done [#allocation6], 2048
    $region21: #{tpu_custom_call.1} parent=1 // pred_fallthru
      _
    %s63 = sld [smem:[#allocation3]]
    %s64 = smul.u32 16, %s63
    %p65 = scmp.lt.s32.totalorder %s64, 15
    %s66 = scalar_select %p65, %s64, 15
    %s67 = smul.addr %s66, 8
    %s68 = scalar_lea.vmem %s2, %s67
    %s69 = sld [smem:[#allocation3]]
    %s70 = smul.u32 16, %s69
    %p71 = scmp.lt.s32.totalorder %s70, 15
    %s72 = scalar_select %p71, %s70, 15
    %s73 = smul.addr %s72, 8
    %s74 = scalar_lea.vmem %s4, %s73
    %s75 = sld [smem:[#allocation4]]
    %p76 = scmp.lt.s32.totalorder %s75, 0
    %s77 = scalar_select %p76, %s75, 0
    %s78 = scalar_lea.vmem %s5, %s77
    %s79 = sld [smem:[#allocation3]]
    %s80 = smul.u32 16, %s79
    %p81 = scmp.lt.s32.totalorder %s80, 15
    %s82 = scalar_select %p81, %s80, 15
    %s83 = smul.addr %s82, 8
    %s84 = scalar_lea.vmem %s2, %s83
    %s85 = sld [smem:[#allocation3]]
    %s86 = smul.u32 16, %s85
    %s87 = sld [smem:[#allocation4]]
    %s88 = smul.u32 16, %s87
    %s89 = sld [smem:[#allocation3]]
    %s90 = smul.u32 16, %s89
    %p91 = scmp.lt.s32.totalorder %s90, 15
    %s92 = scalar_select %p91, %s90, 15
    %s93 = smul.addr %s92, 8
    %s94 = scalar_lea.vmem %s4, %s93
    %s95 = sld [smem:[#allocation3]]
    %s96 = smul.u32 16, %s95
    %s97 = sld [smem:[#allocation4]]
    %p98 = scmp.lt.s32.totalorder %s97, 0
    %s99 = scalar_select %p98, %s97, 0
    %s100 = scalar_lea.vmem %s5, %s99
    %s101 = sld [smem:[#allocation4]]
    %v102 = vld [vmem:[%s84] sm:$0xff]
    %v103 = vld [vmem:[%s84 + $0x8] sm:$0xff]
    %v104 = vld [vmem:[%s84 + $0x10] sm:$0xff]
    %v105 = vld [vmem:[%s84 + $0x18] sm:$0xff]
    %v106 = vld [vmem:[%s84 + $0x20] sm:$0xff]
    %v107 = vld [vmem:[%s84 + $0x28] sm:$0xff]
    %v108 = vld [vmem:[%s84 + $0x30] sm:$0xff]
    %v109 = vld [vmem:[%s84 + $0x38] sm:$0xff]
    %v110 = vld [vmem:[%s84 + $0x40] sm:$0xff]
    %v111 = vld [vmem:[%s84 + $0x48] sm:$0xff]
    %v112 = vld [vmem:[%s84 + $0x50] sm:$0xff]
    %v113 = vld [vmem:[%s84 + $0x58] sm:$0xff]
    %v114 = vld [vmem:[%s84 + $0x60] sm:$0xff]
    %v115 = vld [vmem:[%s84 + $0x68] sm:$0xff]
    %v116 = vld [vmem:[%s84 + $0x70] sm:$0xff]
    %v117 = vld [vmem:[%s84 + $0x78] sm:$0xff]
    %v118 = vld [vmem:[#allocation5] sm:$0xff]
    %v119 = vld [vmem:[#allocation5 + $0x8] sm:$0xff]
    %v120 = vld [vmem:[#allocation5 + $0x10] sm:$0xff]
    %v121 = vld [vmem:[#allocation5 + $0x18] sm:$0xff]
    %v122 = vld [vmem:[#allocation5 + $0x20] sm:$0xff]
    %v123 = vld [vmem:[#allocation5 + $0x28] sm:$0xff]
    %v124 = vld [vmem:[#allocation5 + $0x30] sm:$0xff]
    %v125 = vld [vmem:[#allocation5 + $0x38] sm:$0xff]
    %v126 = vld [vmem:[#allocation5 + $0x40] sm:$0xff]
    %v127 = vld [vmem:[#allocation5 + $0x48] sm:$0xff]
    %v128 = vld [vmem:[#allocation5 + $0x50] sm:$0xff]
    %v129 = vld [vmem:[#allocation5 + $0x58] sm:$0xff]
    %v130 = vld [vmem:[#allocation5 + $0x60] sm:$0xff]
    %v131 = vld [vmem:[#allocation5 + $0x68] sm:$0xff]
    %v132 = vld [vmem:[#allocation5 + $0x70] sm:$0xff]
    %v133 = vld [vmem:[#allocation5 + $0x78] sm:$0xff]
    %134 = vmatpush.xpose.msra.mxu0 %v133
    %135 = vmatpush.xpose.msra.mxu0 %v132
    %136 = vmatpush.xpose.msra.mxu0 %v131
    %137 = vmatpush.xpose.msra.mxu0 %v130
    %138 = vmatpush.xpose.msra.mxu0 %v129
    %139 = vmatpush.xpose.msra.mxu0 %v128
    %140 = vmatpush.xpose.msra.mxu0 %v127
    %141 = vmatpush.xpose.msra.mxu0 %v126
    %142 = vmatpush.xpose.msra.mxu0 %v125
    %143 = vmatpush.xpose.msra.mxu0 %v124
    %144 = vmatpush.xpose.msra.mxu0 %v123
    %145 = vmatpush.xpose.msra.mxu0 %v122
    %146 = vmatpush.xpose.msra.mxu0 %v121
    %147 = vmatpush.xpose.msra.mxu0 %v120
    %148 = vmatpush.xpose.msra.mxu0 %v119
    %149 = vmatpush.xpose.msra.mxu0 %v118
    %150 = vmatmul.f32.gmra.mxu0 %v102
    %v151 = vpop.f32.mrf.mxu0
    %v152 = vadd.f32 0.0, %v151
    %153 = vmatmul.f32.gmra.mxu0 %v103
    %v154 = vpop.f32.mrf.mxu0
    %v155 = vadd.f32 0.0, %v154
    %156 = vmatmul.f32.gmra.mxu0 %v104
    %v157 = vpop.f32.mrf.mxu0
    %v158 = vadd.f32 0.0, %v157
    %159 = vmatmul.f32.gmra.mxu0 %v105
    %v160 = vpop.f32.mrf.mxu0
    %v161 = vadd.f32 0.0, %v160
    %162 = vmatmul.f32.gmra.mxu0 %v106
    %v163 = vpop.f32.mrf.mxu0
    %v164 = vadd.f32 0.0, %v163
    %165 = vmatmul.f32.gmra.mxu0 %v107
    %v166 = vpop.f32.mrf.mxu0
    %v167 = vadd.f32 0.0, %v166
    %168 = vmatmul.f32.gmra.mxu0 %v108
    %v169 = vpop.f32.mrf.mxu0
    %v170 = vadd.f32 0.0, %v169
    %171 = vmatmul.f32.gmra.mxu0 %v109
    %v172 = vpop.f32.mrf.mxu0
    %v173 = vadd.f32 0.0, %v172
    %174 = vmatmul.f32.gmra.mxu0 %v110
    %v175 = vpop.f32.mrf.mxu0
    %v176 = vadd.f32 0.0, %v175
    %177 = vmatmul.f32.gmra.mxu0 %v111
    %v178 = vpop.f32.mrf.mxu0
    %v179 = vadd.f32 0.0, %v178
    %180 = vmatmul.f32.gmra.mxu0 %v112
    %v181 = vpop.f32.mrf.mxu0
    %v182 = vadd.f32 0.0, %v181
    %183 = vmatmul.f32.gmra.mxu0 %v113
    %v184 = vpop.f32.mrf.mxu0
    %v185 = vadd.f32 0.0, %v184
    %186 = vmatmul.f32.gmra.mxu0 %v114
    %v187 = vpop.f32.mrf.mxu0
    %v188 = vadd.f32 0.0, %v187
    %189 = vmatmul.f32.gmra.mxu0 %v115
    %v190 = vpop.f32.mrf.mxu0
    %v191 = vadd.f32 0.0, %v190
    %192 = vmatmul.f32.gmra.mxu0 %v116
    %v193 = vpop.f32.mrf.mxu0
    %v194 = vadd.f32 0.0, %v193
    %195 = vmatmul.f32.gmra.mxu0 %v117
    %v196 = vpop.f32.mrf.mxu0
    %v197 = vadd.f32 0.0, %v196
    %198 = vdwg.mxu0
    %v199 = vld [vmem:[%s94] sm:$0xff]
    %v200 = vld [vmem:[%s94 + $0x8] sm:$0xff]
    %v201 = vld [vmem:[%s94 + $0x10] sm:$0xff]
    %v202 = vld [vmem:[%s94 + $0x18] sm:$0xff]
    %v203 = vld [vmem:[%s94 + $0x20] sm:$0xff]
    %v204 = vld [vmem:[%s94 + $0x28] sm:$0xff]
    %v205 = vld [vmem:[%s94 + $0x30] sm:$0xff]
    %v206 = vld [vmem:[%s94 + $0x38] sm:$0xff]
    %v207 = vld [vmem:[%s94 + $0x40] sm:$0xff]
    %v208 = vld [vmem:[%s94 + $0x48] sm:$0xff]
    %v209 = vld [vmem:[%s94 + $0x50] sm:$0xff]
    %v210 = vld [vmem:[%s94 + $0x58] sm:$0xff]
    %v211 = vld [vmem:[%s94 + $0x60] sm:$0xff]
    %v212 = vld [vmem:[%s94 + $0x68] sm:$0xff]
    %v213 = vld [vmem:[%s94 + $0x70] sm:$0xff]
    %v214 = vld [vmem:[%s94 + $0x78] sm:$0xff]
    %v215 = vld [vmem:[%s100] sm:$0x1]
    %216 = vset.pattern.permute.xlu0 0
    %217 = vperm.xlu0 %216, %v199
    %v218 = vpop.permute.xlu0 %217
    %219 = vset.pattern.permute.xlu0 0
    %220 = vperm.xlu0 %219, %v200
    %v221 = vpop.permute.xlu0 %220
    %222 = vset.pattern.permute.xlu0 0
    %223 = vperm.xlu0 %222, %v201
    %v224 = vpop.permute.xlu0 %223
    %225 = vset.pattern.permute.xlu0 0
    %226 = vperm.xlu0 %225, %v202
    %v227 = vpop.permute.xlu0 %226
    %228 = vset.pattern.permute.xlu0 0
    %229 = vperm.xlu0 %228, %v203
    %v230 = vpop.permute.xlu0 %229
    %231 = vset.pattern.permute.xlu0 0
    %232 = vperm.xlu0 %231, %v204
    %v233 = vpop.permute.xlu0 %232
    %234 = vset.pattern.permute.xlu0 0
    %235 = vperm.xlu0 %234, %v205
    %v236 = vpop.permute.xlu0 %235
    %237 = vset.pattern.permute.xlu0 0
    %238 = vperm.xlu0 %237, %v206
    %v239 = vpop.permute.xlu0 %238
    %240 = vset.pattern.permute.xlu0 0
    %241 = vperm.xlu0 %240, %v207
    %v242 = vpop.permute.xlu0 %241
    %243 = vset.pattern.permute.xlu0 0
    %244 = vperm.xlu0 %243, %v208
    %v245 = vpop.permute.xlu0 %244
    %246 = vset.pattern.permute.xlu0 0
    %247 = vperm.xlu0 %246, %v209
    %v248 = vpop.permute.xlu0 %247
    %249 = vset.pattern.permute.xlu0 0
    %250 = vperm.xlu0 %249, %v210
    %v251 = vpop.permute.xlu0 %250
    %252 = vset.pattern.permute.xlu0 0
    %253 = vperm.xlu0 %252, %v211
    %v254 = vpop.permute.xlu0 %253
    %255 = vset.pattern.permute.xlu0 0
    %256 = vperm.xlu0 %255, %v212
    %v257 = vpop.permute.xlu0 %256
    %258 = vset.pattern.permute.xlu0 0
    %259 = vperm.xlu0 %258, %v213
    %v260 = vpop.permute.xlu0 %259
    %261 = vset.pattern.permute.xlu0 0
    %262 = vperm.xlu0 %261, %v214
    %v263 = vpop.permute.xlu0 %262
    %v264 = vperm.slane %v215, 0
    %vm265 = vcmp.eq.s32.totalorder %v218, %v264
    %vm266 = vcmp.eq.s32.totalorder %v221, %v264
    %vm267 = vcmp.eq.s32.totalorder %v224, %v264
    %vm268 = vcmp.eq.s32.totalorder %v227, %v264
    %vm269 = vcmp.eq.s32.totalorder %v230, %v264
    %vm270 = vcmp.eq.s32.totalorder %v233, %v264
    %vm271 = vcmp.eq.s32.totalorder %v236, %v264
    %vm272 = vcmp.eq.s32.totalorder %v239, %v264
    %vm273 = vcmp.eq.s32.totalorder %v242, %v264
    %vm274 = vcmp.eq.s32.totalorder %v245, %v264
    %vm275 = vcmp.eq.s32.totalorder %v248, %v264
    %vm276 = vcmp.eq.s32.totalorder %v251, %v264
    %vm277 = vcmp.eq.s32.totalorder %v254, %v264
    %vm278 = vcmp.eq.s32.totalorder %v257, %v264
    %vm279 = vcmp.eq.s32.totalorder %v260, %v264
    %vm280 = vcmp.eq.s32.totalorder %v263, %v264
    %v281 = vsub.f32 1.0, %v152
    %v282 = vsub.f32 1.0, %v155
    %v283 = vsub.f32 1.0, %v158
    %v284 = vsub.f32 1.0, %v161
    %v285 = vsub.f32 1.0, %v164
    %v286 = vsub.f32 1.0, %v167
    %v287 = vsub.f32 1.0, %v170
    %v288 = vsub.f32 1.0, %v173
    %v289 = vsub.f32 1.0, %v176
    %v290 = vsub.f32 1.0, %v179
    %v291 = vsub.f32 1.0, %v182
    %v292 = vsub.f32 1.0, %v185
    %v293 = vsub.f32 1.0, %v188
    %v294 = vsub.f32 1.0, %v191
    %v295 = vsub.f32 1.0, %v194
    %v296 = vsub.f32 1.0, %v197
    %v297 = vmax.f32 %v281, 0.0
    %v298 = vmax.f32 %v282, 0.0
    %v299 = vmax.f32 %v283, 0.0
    %v300 = vmax.f32 %v284, 0.0
    %v301 = vmax.f32 %v285, 0.0
    %v302 = vmax.f32 %v286, 0.0
    %v303 = vmax.f32 %v287, 0.0
    %v304 = vmax.f32 %v288, 0.0
    %v305 = vmax.f32 %v289, 0.0
    %v306 = vmax.f32 %v290, 0.0
    %v307 = vmax.f32 %v291, 0.0
    %v308 = vmax.f32 %v292, 0.0
    %v309 = vmax.f32 %v293, 0.0
    %v310 = vmax.f32 %v294, 0.0
    %v311 = vmax.f32 %v295, 0.0
    %v312 = vmax.f32 %v296, 0.0
    %vm313 = vcmp.gt.f32.partialorder %v152, 0.3
    %vm314 = vcmp.gt.f32.partialorder %v155, 0.3
    %vm315 = vcmp.gt.f32.partialorder %v158, 0.3
    %vm316 = vcmp.gt.f32.partialorder %v161, 0.3
    %vm317 = vcmp.gt.f32.partialorder %v164, 0.3
    %vm318 = vcmp.gt.f32.partialorder %v167, 0.3
    %vm319 = vcmp.gt.f32.partialorder %v170, 0.3
    %vm320 = vcmp.gt.f32.partialorder %v173, 0.3
    %vm321 = vcmp.gt.f32.partialorder %v176, 0.3
    %vm322 = vcmp.gt.f32.partialorder %v179, 0.3
    %vm323 = vcmp.gt.f32.partialorder %v182, 0.3
    %vm324 = vcmp.gt.f32.partialorder %v185, 0.3
    %vm325 = vcmp.gt.f32.partialorder %v188, 0.3
    %vm326 = vcmp.gt.f32.partialorder %v191, 0.3
    %vm327 = vcmp.gt.f32.partialorder %v194, 0.3
    %vm328 = vcmp.gt.f32.partialorder %v197, 0.3
    %v329 = vsel %vm313, %v152, 0.0
    %v330 = vsel %vm314, %v155, 0.0
    %v331 = vsel %vm315, %v158, 0.0
    %v332 = vsel %vm316, %v161, 0.0
    %v333 = vsel %vm317, %v164, 0.0
    %v334 = vsel %vm318, %v167, 0.0
    %v335 = vsel %vm319, %v170, 0.0
    %v336 = vsel %vm320, %v173, 0.0
    %v337 = vsel %vm321, %v176, 0.0
    %v338 = vsel %vm322, %v179, 0.0
    %v339 = vsel %vm323, %v182, 0.0
    %v340 = vsel %vm324, %v185, 0.0
    %v341 = vsel %vm325, %v188, 0.0
    %v342 = vsel %vm326, %v191, 0.0
    %v343 = vsel %vm327, %v194, 0.0
    %v344 = vsel %vm328, %v197, 0.0
    %v345 = vsel %vm265, %v297, %v329
    %v346 = vsel %vm266, %v298, %v330
    %v347 = vsel %vm267, %v299, %v331
    %v348 = vsel %vm268, %v300, %v332
    %v349 = vsel %vm269, %v301, %v333
    %v350 = vsel %vm270, %v302, %v334
    %v351 = vsel %vm271, %v303, %v335
    %v352 = vsel %vm272, %v304, %v336
    %v353 = vsel %vm273, %v305, %v337
    %v354 = vsel %vm274, %v306, %v338
    %v355 = vsel %vm275, %v307, %v339
    %v356 = vsel %vm276, %v308, %v340
    %v357 = vsel %vm277, %v309, %v341
    %v358 = vsel %vm278, %v310, %v342
    %v359 = vsel %vm279, %v311, %v343
    %v360 = vsel %vm280, %v312, %v344
    %v361 = vadd.f32 %v345, %v346
    %v362 = vadd.f32 %v361, %v347
    %v363 = vadd.f32 %v362, %v348
    %v364 = vadd.f32 %v363, %v349
    %v365 = vadd.f32 %v364, %v350
    %v366 = vadd.f32 %v365, %v351
    %v367 = vadd.f32 %v366, %v352
    %v368 = vadd.f32 %v367, %v353
    %v369 = vadd.f32 %v368, %v354
    %v370 = vadd.f32 %v369, %v355
    %v371 = vadd.f32 %v370, %v356
    %v372 = vadd.f32 %v371, %v357
    %v373 = vadd.f32 %v372, %v358
    %v374 = vadd.f32 %v373, %v359
    %v375 = vadd.f32 %v374, %v360
    %s376 = sld [smem:[#allocation3]]
    %s377 = sld [smem:[#allocation4]]
    %s378 = sadd.s32 %s376, 1
    %p379 = scmp.ge.s32.totalorder %s377, %s378
    %s380 = scalar_select %p379, 2.0, 1.0
    %v381 = vstv %s380
    %v382 = vmul.f32 %v381, %v375
    %383 = vst [vmem:[#allocation8] sm:$0xff] %v382
    // Predicated region
    $region22: #{tpu_custom_call.1} parent=1 // pred_check
      _
    $region23: #{tpu_custom_call.1} parent=1 // pred_check_branch
      %385 = sbr.rel (0) target = $region25
    $region24: #{tpu_custom_call.1} parent=1 // pred_region
      %387 = vsyncadd [#allocation7], 0
      %s389 = sshll.u32 [#allocation8], 4
      %s390 = int_to_ptr.vmem [resolvable:$true] %s389
      %s391 = sshll.u32 %s6, 4
      %s392 = int_to_ptr.hbm [resolvable:$true] %s391
      %394 = dma.vmem_to_hbm [thread:$0]  %s390, 128, %s392, [#allocation7]
    $region25: #{tpu_custom_call.1} parent=1 // pred_fallthru
      _
    // Predicated region
    $region26: #{tpu_custom_call.1} parent=1 // pred_check
      _
    $region27: #{tpu_custom_call.1} parent=1 // pred_check_branch
      %396 = sbr.rel (0) target = $region29
    $region28: #{tpu_custom_call.1} parent=1 // pred_region
      %398 = dma.done [#allocation7], 128
    $region29: #{tpu_custom_call.1} parent=1 // pred_fallthru
      _
    %399 = vsyncpa [#allocation6], 1
    %400 = vsyncpa [#allocation7], 1

</llo_original>
